<compile_context>
chip_gen: v5e
topology: v5e:2x2
jax: 0.10.0
libtpu: 0.0.40
codegen_flags: <defaults>
</compile_context>

<pallas_src>
import functools

import jax
import jax.numpy as jnp
from jax.experimental import pallas as pl
from jax.experimental.pallas import tpu as pltpu


def _round_up(n, m):
    return ((n + m - 1) // m) * m


def _residual_kernel(x_ref, bits_ref, w_ref, b_ref, o_ref, *, p):
    """o = x + dropout(x @ W + b, p)  for one (TM, Hp) row tile."""
    x = x_ref[...]                                            # (TM, Hp)
    # Linear sublayer: MXU matmul with f32 accumulation + bias broadcast.
    y = jnp.dot(x, w_ref[...], preferred_element_type=jnp.float32)
    y = y + b_ref[...]                                        # (1, Hp) broadcast

    if p > 0.0:
        # Inverted dropout via integer threshold: P(bits < thresh) == p.
        thresh = jnp.uint32(min(int(round(p * (1 << 32))), (1 << 32) - 1))
        keep = bits_ref[...] >= thresh                        # keep prob = 1 - p
        inv_keep = jnp.float32(1.0 / (1.0 - p))
        y = jnp.where(keep, y * inv_keep, jnp.float32(0.0))

    o_ref[...] = (x + y).astype(o_ref.dtype)


def residual_connection(x, w_t, b, dropout_key, *, p=0.1):
    """x: (B, S, H) f32; w_t: (H, H) already transposed (in, out); b: (H,)."""
    B, S, H = x.shape
    M = B * S

    # Lane-dense layout: pad H to a multiple of 128; pick a row tile that is a
    # multiple of 8 sublanes (512 rows when M is large enough for pipelining).
    Hp = _round_up(H, 128)
    tm = 512 if M >= 512 else _round_up(M, 8)
    Mp = _round_up(M, tm)
    grid = (Mp // tm,)

    x2 = jnp.zeros((Mp, Hp), x.dtype).at[:M, :H].set(x.reshape(M, H))
    w2 = jnp.zeros((Hp, Hp), w_t.dtype).at[:H, :H].set(w_t)
    b2 = jnp.zeros((1, Hp), b.dtype).at[0, :H].set(b)

    # TODO(synk): on real TPU the dropout bits could come from the in-kernel
    # hardware PRNG (pltpu.prng_seed / prng_random_bits, seeded per grid step)
    # to avoid streaming an extra (M, Hp) uint32 array from HBM; generated
    # host-side here so the kernel also runs under interpret mode.
    bits = jax.random.bits(dropout_key, (Mp, Hp), dtype=jnp.uint32)

    # VMEM budget: double-buffered x / bits / out tiles + resident W and bias.
    tile_bytes = tm * Hp * 4
    vmem_need = 2 * 3 * tile_bytes + Hp * Hp * 4 + Hp * 4
    vmem_limit = min(max(int(vmem_need * 1.5), 16 * 1024 * 1024),
                     48 * 1024 * 1024)

    out = pl.pallas_call(
        functools.partial(_residual_kernel, p=float(p)),
        out_shape=jax.ShapeDtypeStruct((Mp, Hp), x.dtype),
        grid_spec=pltpu.PrefetchScalarGridSpec(
            num_scalar_prefetch=0,
            grid=grid,
            in_specs=[
                pl.BlockSpec((tm, Hp), lambda i: (i, 0)),   # x row tile
                pl.BlockSpec((tm, Hp), lambda i: (i, 0)),   # dropout bits tile
                pl.BlockSpec((Hp, Hp), lambda i: (0, 0)),   # weight (resident)
                pl.BlockSpec((1, Hp), lambda i: (0, 0)),    # bias   (resident)
            ],
            out_specs=pl.BlockSpec((tm, Hp), lambda i: (i, 0)),
        ),
        compiler_params=pltpu.CompilerParams(
            dimension_semantics=("parallel",),
            vmem_limit_bytes=vmem_limit,
        ),
    )(x2, bits, w2, b2)

    return out[:M, :H].reshape(B, S, H)


if __name__ == "__main__":
    key = jax.random.PRNGKey(0)
    kx, kw, kb, kd = jax.random.split(key, 4)

    B, S, H = 2, 8, 32
    dropout_p = 0.1

    x = jax.random.normal(kx, (B, S, H), dtype=jnp.float32)
    # Linear(H, H): PyTorch stores weight as (out, in); we pass W^T = (in, out).
    w = jax.random.normal(kw, (H, H), dtype=jnp.float32) * (1.0 / jnp.sqrt(H))
    w_t = w.T
    b = jax.random.normal(kb, (H,), dtype=jnp.float32) * 0.01

    out = jax.block_until_ready(
        residual_connection(x, w_t, b, kd, p=dropout_p)
    )

    # Residual connection requires same size; values must be finite.
    assert out.shape == x.shape
    assert bool(jnp.all(jnp.isfinite(out)))

    # Cross-check with dropout disabled: kernel must equal x + xW + b.
    out_nodrop = jax.block_until_ready(
        residual_connection(x, w_t, b, kd, p=0.0)
    )
    y_ref = (
        jnp.dot(x.reshape(-1, H), w_t, precision=jax.lax.Precision.HIGHEST) + b
    ).reshape(B, S, H)
    assert bool(jnp.allclose(out_nodrop, x + y_ref, atol=1e-5, rtol=1e-5))

    # With dropout: every element is either x (sublayer output dropped) or
    # x + sublayer_output / (1 - p) (kept, inverted-dropout scaling).
    dropped = jnp.isclose(out, x, atol=1e-6)
    kept = jnp.isclose(out, x + y_ref / (1.0 - dropout_p), atol=1e-4, rtol=1e-4)
    assert bool(jnp.all(dropped | kept))

    print("KERNEL_OK")
</pallas_src>

<mosaic_0001>
module attributes {stable_mosaic.version = 11 : i64} {
  func.func @_residual_kernel(%arg0: i32, %arg1: memref<16x128xf32, #tpu.memory_space<vmem>>, %arg2: memref<16x128xi32, #tpu.memory_space<vmem>>, %arg3: memref<128x128xf32, #tpu.memory_space<vmem>>, %arg4: memref<1x128xf32, #tpu.memory_space<vmem>>, %arg5: memref<16x128xf32, #tpu.memory_space<vmem>>) attributes {dimension_semantics = [#tpu.dimension_semantics<parallel>], iteration_bounds = array<i64: 1>, scalar_prefetch = 0 : i64, scratch_operands = 0 : i64, tpu.core_type = #tpu.core_type<tc>, window_params = [{transform_indices = @transform_0, window_bounds = array<i64: 16, 128>}, {transform_indices = @transform_1, window_bounds = array<i64: 16, 128>}, {pipeline_mode = #tpu.pipeline_mode<synchronous>, transform_indices = @transform_2, window_bounds = array<i64: 128, 128>}, {pipeline_mode = #tpu.pipeline_mode<synchronous>, transform_indices = @transform_3, window_bounds = array<i64: 1, 128>}, {transform_indices = @transform_4, window_bounds = array<i64: 16, 128>}]} {
    %c0 = arith.constant 0 : index
    %c0_0 = arith.constant 0 : index
    %0 = vector.load %arg1[%c0, %c0_0] : memref<16x128xf32, #tpu.memory_space<vmem>>, vector<16x128xf32>
    %c0_1 = arith.constant 0 : index
    %c0_2 = arith.constant 0 : index
    %1 = vector.load %arg3[%c0_1, %c0_2] : memref<128x128xf32, #tpu.memory_space<vmem>>, vector<128x128xf32>
    %cst = arith.constant dense<0.000000e+00> : vector<16x128xf32>
    %2 = tpu.matmul %0, %1, %cst {dimension_numbers = #tpu.dot_dimension_numbers<[1], [0], [0], [1], [0, 0, 1, 1], [], []>} : vector<16x128xf32>, vector<128x128xf32>, vector<16x128xf32> -> vector<16x128xf32>
    %c0_3 = arith.constant 0 : index
    %c0_4 = arith.constant 0 : index
    %3 = vector.load %arg4[%c0_3, %c0_4] : memref<1x128xf32, #tpu.memory_space<vmem>>, vector<1x128xf32>
    %4 = vector.broadcast %3 : vector<1x128xf32> to vector<16x128xf32>
    %5 = arith.addf %2, %4 : vector<16x128xf32>
    %c0_5 = arith.constant 0 : index
    %c0_6 = arith.constant 0 : index
    %6 = vector.load %arg2[%c0_5, %c0_6] : memref<16x128xi32, #tpu.memory_space<vmem>>, vector<16x128xi32>
    %c429496730_i32 = arith.constant 429496730 : i32
    %7 = vector.broadcast %c429496730_i32 : i32 to vector<16x128xi32>
    %8 = arith.cmpi uge, %6, %7 : vector<16x128xi32>
    %cst_7 = arith.constant 1.11111116 : f32
    %9 = vector.broadcast %cst_7 : f32 to vector<16x128xf32>
    %10 = arith.mulf %5, %9 : vector<16x128xf32>
    %cst_8 = arith.constant 0.000000e+00 : f32
    %11 = vector.broadcast %cst_8 : f32 to vector<16x128xf32>
    %12 = arith.select %8, %10, %11 : vector<16x128xi1>, vector<16x128xf32>
    %13 = arith.addf %0, %12 : vector<16x128xf32>
    %c0_9 = arith.constant 0 : index
    %c0_10 = arith.constant 0 : index
    %14 = vector.load %arg5[%c0_9, %c0_10] : memref<16x128xf32, #tpu.memory_space<vmem>>, vector<16x128xf32>
    tpu.vector_store %arg5[%c0_9, %c0_10], %13 {strides = array<i32>} : memref<16x128xf32, #tpu.memory_space<vmem>>, vector<16x128xf32>,
    return
  }
  func.func @transform_0(%arg0: i32) -> (i32, i32) {
    %c0_i32 = arith.constant 0 : i32
    %c0_i32_0 = arith.constant 0 : i32
    return %arg0, %c0_i32 : i32, i32
  }
  func.func @transform_1(%arg0: i32) -> (i32, i32) {
    %c0_i32 = arith.constant 0 : i32
    %c0_i32_0 = arith.constant 0 : i32
    return %arg0, %c0_i32 : i32, i32
  }
  func.func @transform_2(%arg0: i32) -> (i32, i32) {
    %c0_i32 = arith.constant 0 : i32
    %c0_i32_0 = arith.constant 0 : i32
    %c0_i32_1 = arith.constant 0 : i32
    return %c0_i32, %c0_i32_0 : i32, i32
  }
  func.func @transform_3(%arg0: i32) -> (i32, i32) {
    %c0_i32 = arith.constant 0 : i32
    %c0_i32_0 = arith.constant 0 : i32
    %c0_i32_1 = arith.constant 0 : i32
    return %c0_i32, %c0_i32_0 : i32, i32
  }
  func.func @transform_4(%arg0: i32) -> (i32, i32) {
    %c0_i32 = arith.constant 0 : i32
    %c0_i32_0 = arith.constant 0 : i32
    return %arg0, %c0_i32 : i32, i32
  }
}

</mosaic_0001>

<llo_original>
// kernel: tpu_custom_call.1
$region0: #{tpu_custom_call.1}
  #allocation0 [shape = 'u32[]', space=smem, size = 0x4, offset = 0x4, fixed_abs, tag = 'smem constant byte address 0x4 - core index']
  #allocation1 [shape = 'u32[72,128]{1,0:T(1,128)}', space=vmem, size = 0x9000, scoped, tag = 'internal scratch']
  %s0 = inlined_call_operand.hbm [shape: f32[16,128], index: 0, kind: input, shape index: {}]
  %s1 = inlined_call_operand.hbm [shape: u32[16,128], index: 1, kind: input, shape index: {}]
  %s2 = inlined_call_operand.hbm [shape: f32[128,128], index: 2, kind: input, shape index: {}]
  %s3 = inlined_call_operand.vmem [shape: f32[1,128], index: 3, kind: input, shape index: {}]
  %s4 = inlined_call_operand.hbm [shape: f32[16,128], index: 4, kind: output, shape index: {}]
  %s5 = sld [smem:[#allocation0]]
  $region38: #{tpu_custom_call.1} parent=0
    _
  %s7 = ssub.s32 1, %s5
  %s8 = scalar_select 0, %s7, %s5
  $region1: #{tpu_custom_call.1} parent=0
    #allocation2 [shape = 'u8[8192]{0}', space=vmem, size = 0x2000, scoped, tag = 'input window, operand 0, single buffered']
    #allocation3 [shape = 's32[1]{0}', space=sflag, size = 0x4, scoped, tag = 'scoped memory for tpu_custom_call.1']
    #allocation4 [shape = 's32[1]{0}', space=sflag, size = 0x4, scoped, tag = 'scoped memory for tpu_custom_call.1']
    #allocation5 [shape = 'u8[8192]{0}', space=vmem, size = 0x2000, scoped, tag = 'input window, operand 1, single buffered']
    #allocation6 [shape = 's32[1]{0}', space=sflag, size = 0x4, scoped, tag = 'scoped memory for tpu_custom_call.1']
    #allocation7 [shape = 'u8[65536]{0}', space=vmem, size = 0x10000, scoped, tag = 'input window, operand 2, single buffered']
    #allocation8 [shape = 'u8[8192]{0}', space=vmem, size = 0x2000, scoped, tag = 'output window, operand 0, single buffered']
    %9 = vsyncpa [#allocation3], 0
    %10 = vsyncpa [#allocation6], 0
    %11 = vsyncpa [#allocation4], 0
    // Predicated region
    $region2: #{tpu_custom_call.1} parent=1 // pred_check
      _
    $region3: #{tpu_custom_call.1} parent=1 // pred_check_branch
      %13 = sbr.rel (0) target = $region5
    $region4: #{tpu_custom_call.1} parent=1 // pred_region
      %15 = vsyncadd [#allocation3], 0
      %s16 = sshll.u32 %s0, 4
      %s17 = int_to_ptr.hbm [resolvable:$true] %s16
      %s18 = sshll.u32 [#allocation2], 4
      %s19 = int_to_ptr.vmem [resolvable:$true] %s18
      %24 = dma.hbm_to_vmem [thread:$0]  %s17, 256, %s19, [#allocation3], 128, 128, 8
    $region5: #{tpu_custom_call.1} parent=1 // pred_fallthru
      _
    // Predicated region
    $region6: #{tpu_custom_call.1} parent=1 // pred_check
      _
    $region7: #{tpu_custom_call.1} parent=1 // pred_check_branch
      %26 = sbr.rel (0) target = $region9
    $region8: #{tpu_custom_call.1} parent=1 // pred_region
      %28 = vsyncadd [#allocation6], 0
      %s29 = sshll.u32 %s1, 4
      %s30 = int_to_ptr.hbm [resolvable:$true] %s29
      %s31 = sshll.u32 [#allocation5], 4
      %s32 = int_to_ptr.vmem [resolvable:$true] %s31
      %37 = dma.hbm_to_vmem [thread:$0]  %s30, 256, %s32, [#allocation6], 128, 128, 8
    $region9: #{tpu_custom_call.1} parent=1 // pred_fallthru
      _
    // Predicated region
    $region10: #{tpu_custom_call.1} parent=1 // pred_check
      _
    $region11: #{tpu_custom_call.1} parent=1 // pred_check_branch
      %39 = sbr.rel (0) target = $region13
    $region12: #{tpu_custom_call.1} parent=1 // pred_region
      %41 = vsyncadd [#allocation6], 0
      %s42 = sshll.u32 %s2, 4
      %s43 = int_to_ptr.hbm [resolvable:$true] %s42
      %s44 = sshll.u32 [#allocation7], 4
      %s45 = int_to_ptr.vmem [resolvable:$true] %s44
      %50 = dma.hbm_to_vmem [thread:$0]  %s43, 2048, %s45, [#allocation6], 128, 128, 8
    $region13: #{tpu_custom_call.1} parent=1 // pred_fallthru
      _
    // Predicated region
    $region14: #{tpu_custom_call.1} parent=1 // pred_check
      _
    $region15: #{tpu_custom_call.1} parent=1 // pred_check_branch
      %52 = sbr.rel (0) target = $region17
    $region16: #{tpu_custom_call.1} parent=1 // pred_region
      _
    $region17: #{tpu_custom_call.1} parent=1 // pred_fallthru
      _
    // Predicated region
    $region18: #{tpu_custom_call.1} parent=1 // pred_check
      _
    $region19: #{tpu_custom_call.1} parent=1 // pred_check_branch
      %54 = sbr.rel (0) target = $region21
    $region20: #{tpu_custom_call.1} parent=1 // pred_region
      %56 = dma.done [#allocation3], 256
    $region21: #{tpu_custom_call.1} parent=1 // pred_fallthru
      _
    // Predicated region
    $region22: #{tpu_custom_call.1} parent=1 // pred_check
      _
    $region23: #{tpu_custom_call.1} parent=1 // pred_check_branch
      %58 = sbr.rel (0) target = $region25
    $region24: #{tpu_custom_call.1} parent=1 // pred_region
      %60 = dma.done [#allocation6], 256
    $region25: #{tpu_custom_call.1} parent=1 // pred_fallthru
      _
    // Predicated region
    $region26: #{tpu_custom_call.1} parent=1 // pred_check
      _
    $region27: #{tpu_custom_call.1} parent=1 // pred_check_branch
      %62 = sbr.rel (0) target = $region29
    $region28: #{tpu_custom_call.1} parent=1 // pred_region
      %64 = dma.done [#allocation6], 2048
    $region29: #{tpu_custom_call.1} parent=1 // pred_fallthru
      _
    %v65 = vld [vmem:[#allocation2] sm:$0xff]
    %v66 = vld [vmem:[#allocation2 + $0x8] sm:$0xff]
    %v67 = vld [vmem:[#allocation7] sm:$0xff]
    %v68 = vld [vmem:[#allocation7 + $0x8] sm:$0xff]
    %v69 = vld [vmem:[#allocation7 + $0x10] sm:$0xff]
    %v70 = vld [vmem:[#allocation7 + $0x18] sm:$0xff]
    %v71 = vld [vmem:[#allocation7 + $0x20] sm:$0xff]
    %v72 = vld [vmem:[#allocation7 + $0x28] sm:$0xff]
    %v73 = vld [vmem:[#allocation7 + $0x30] sm:$0xff]
    %v74 = vld [vmem:[#allocation7 + $0x38] sm:$0xff]
    %v75 = vld [vmem:[#allocation7 + $0x40] sm:$0xff]
    %v76 = vld [vmem:[#allocation7 + $0x48] sm:$0xff]
    %v77 = vld [vmem:[#allocation7 + $0x50] sm:$0xff]
    %v78 = vld [vmem:[#allocation7 + $0x58] sm:$0xff]
    %v79 = vld [vmem:[#allocation7 + $0x60] sm:$0xff]
    %v80 = vld [vmem:[#allocation7 + $0x68] sm:$0xff]
    %v81 = vld [vmem:[#allocation7 + $0x70] sm:$0xff]
    %v82 = vld [vmem:[#allocation7 + $0x78] sm:$0xff]
    %v83 = vld [vmem:[%s3] sm:$0x1]
    %v85 = vperm.slane %v83, 0
    %87 = vmatpush.msra.mxu0 %v82
    %88 = vmatpush.msra.mxu0 %v81
    %89 = vmatpush.msra.mxu0 %v80
    %90 = vmatpush.msra.mxu0 %v79
    %91 = vmatpush.msra.mxu0 %v78
    %92 = vmatpush.msra.mxu0 %v77
    %93 = vmatpush.msra.mxu0 %v76
    %94 = vmatpush.msra.mxu0 %v75
    %95 = vmatpush.msra.mxu0 %v74
    %96 = vmatpush.msra.mxu0 %v73
    %97 = vmatpush.msra.mxu0 %v72
    %98 = vmatpush.msra.mxu0 %v71
    %99 = vmatpush.msra.mxu0 %v70
    %100 = vmatpush.msra.mxu0 %v69
    %101 = vmatpush.msra.mxu0 %v68
    %102 = vmatpush.msra.mxu0 %v67
    %103 = vmatmul.f32.gmra.mxu0 %v65
    %v104 = vpop.f32.mrf.mxu0
    %v105 = vadd.f32 %v85, %v104
    %106 = vmatmul.f32.gmra.mxu0 %v66
    %v107 = vpop.f32.mrf.mxu0
    %v108 = vadd.f32 %v85, %v107
    %109 = vdwg.mxu0
    %v110 = vld [vmem:[#allocation5] sm:$0xff]
    %v111 = vld [vmem:[#allocation5 + $0x8] sm:$0xff]
    %v112 = vadd.s32 %v110, 2147483648
    %vm114 = vcmp.ge.s32.totalorder %v112, 2576980378
    %v115 = vadd.s32 %v111, 2147483648
    %vm117 = vcmp.ge.s32.totalorder %v115, 2576980378
    %v118 = vmul.f32 %v105, 1.1111112
    %v119 = vmul.f32 %v108, 1.1111112
    %v120 = vsel %vm114, %v118, 0.0
    %v121 = vsel %vm117, %v119, 0.0
    %v122 = vadd.f32 %v65, %v120
    %v123 = vadd.f32 %v66, %v121
    %124 = vst [vmem:[#allocation8] sm:$0xff] %v122
    %125 = vst [vmem:[#allocation8 + $0x8] sm:$0xff] %v123
    // Predicated region
    $region30: #{tpu_custom_call.1} parent=1 // pred_check
      _
    $region31: #{tpu_custom_call.1} parent=1 // pred_check_branch
      %127 = sbr.rel (0) target = $region33
    $region32: #{tpu_custom_call.1} parent=1 // pred_region
      %129 = vsyncadd [#allocation4], 0
      %s130 = sshll.u32 [#allocation8], 4
      %s131 = int_to_ptr.vmem [resolvable:$true] %s130
      %s132 = sshll.u32 %s4, 4
      %s133 = int_to_ptr.hbm [resolvable:$true] %s132
      %138 = dma.vmem_to_hbm [thread:$0]  %s131, 256, %s133, [#allocation4], 128, 128, 8
    $region33: #{tpu_custom_call.1} parent=1 // pred_fallthru
      _
    // Predicated region
    $region34: #{tpu_custom_call.1} parent=1 // pred_check
      _
    $region35: #{tpu_custom_call.1} parent=1 // pred_check_branch
      %140 = sbr.rel (0) target = $region37
    $region36: #{tpu_custom_call.1} parent=1 // pred_region
      %142 = dma.done [#allocation4], 256
    $region37: #{tpu_custom_call.1} parent=1 // pred_fallthru
      _
    %143 = vsyncpa [#allocation3], 1
    %144 = vsyncpa [#allocation6], 1
    %145 = vsyncpa [#allocation4], 1

</llo_original>
